<compile_context>
chip_gen: v7x
topology: tpu7x:2x2x1
jax: 0.10.0
libtpu: 0.0.40
codegen_flags: <defaults>
</compile_context>

<pallas_src>
import math

import jax
import jax.numpy as jnp
from jax import lax
from jax.experimental import pallas as pl
from jax.experimental.pallas import tpu as pltpu


def _round_up(x, n):
    return ((x + n - 1) // n) * n


def _vmem_block_bytes(tm, tn, d, op_bytes):
    # Double-buffered blocks: x (tm,d) + W (tn,d) in the matmul dtype,
    # out (tm,tn) f32, labels (tm,1) i32.
    return 2 * (op_bytes * (tm * d + tn * d) + 4 * (tm * tn) + 4 * tm)


def _vmem_capacity_bytes():
    try:
        info = pltpu.get_tpu_info()
        cap = getattr(info, "vmem_capacity_bytes", None)
        if cap:
            return int(cap)
    except Exception:
        pass
    return 64 * 1024 * 1024  # conservative default (v7x per-TensorCore)


def _make_arcmargin_kernel(s, m, easy_margin, tn):
    cos_m = math.cos(m)
    sin_m = math.sin(m)
    th = math.cos(math.pi - m)
    mm = math.sin(math.pi - m) * m

    def kernel(x_ref, w_ref, label_ref, out_ref):
        # x and W rows are already unit-norm and in the matmul dtype.
        x = x_ref[...]            # (TM, D)
        w = w_ref[...]            # (TN, D)
        labels = label_ref[...]   # (TM, 1) int32

        cosine = lax.dot_general(
            x, w, dimension_numbers=(((1,), (1,)), ((), ())),
            preferred_element_type=jnp.float32)                     # (TM, TN) f32

        tm = cosine.shape[0]
        # Label-column gather: unshifted column iota vs. tile-local label index.
        col0 = pl.program_id(0) * tn                                # class tile start
        local_lbl = labels - col0                                   # (TM, 1)
        col_ids = lax.broadcasted_iota(jnp.int32, (tm, tn), 1)      # (TM, TN)
        is_label = col_ids == local_lbl                             # (TM, TN) bool

        # Per-row margin math on (TM, 1) vectors only.
        cos_l = jnp.sum(jnp.where(is_label, cosine, 0.0), axis=-1, keepdims=True)
        sin_l = jnp.sqrt(jnp.maximum(1.0 - cos_l * cos_l, 0.0))
        phi_l = cos_l * cos_m - sin_l * sin_m
        if easy_margin:
            phi_l = jnp.where(cos_l > 0.0, phi_l, cos_l)
        else:
            phi_l = jnp.where(cos_l > th, phi_l, cos_l - mm)

        out_ref[...] = jnp.where(is_label, phi_l * s, cosine * s).astype(out_ref.dtype)

    return kernel


def arc_margin_product(x, weight, label, *, s=30.0, m=0.5, easy_margin=False,
                       block_b=512, block_c=2048, matmul_dtype=jnp.bfloat16):
    """ArcMarginProduct.forward(x, label) with the given weight.

    x:      (B, in_features)
    weight: (out_features, in_features)
    label:  (B,) integer class indices
    returns (B, out_features) float32
    """
    B, D = x.shape
    C, D2 = weight.shape
    assert D == D2
    eps = 1e-12  # F.normalize default eps

    # Fold F.normalize into the wrapper-side cast (the copy is made anyway):
    # 1/max(||v||, eps) == rsqrt(max(||v||^2, eps^2)).
    x32 = x.astype(jnp.float32)
    w32 = weight.astype(jnp.float32)
    x_n = x32 * lax.rsqrt(jnp.maximum(jnp.sum(x32 * x32, -1, keepdims=True), eps * eps))
    w_n = w32 * lax.rsqrt(jnp.maximum(jnp.sum(w32 * w32, -1, keepdims=True), eps * eps))

    op_bytes = jnp.dtype(matmul_dtype).itemsize

    # Lane-dense padding: D, C to multiples of 128; B to a multiple of 8.
    D_pad = _round_up(D, 128)
    B8 = _round_up(B, 8)
    C128 = _round_up(C, 128)
    TM = min(block_b, B8)
    TN = min(block_c, C128)

    # Generation-aware tile sizing: keep the double-buffered working set within
    # ~60% of per-core VMEM (64 MiB on v7x, 128 MiB on v5e/v6e).
    vmem_cap = _vmem_capacity_bytes()
    ws_budget = int(0.6 * vmem_cap)
    while TN > 256 and _vmem_block_bytes(TM, TN, D_pad, op_bytes) > ws_budget:
        TN //= 2
    while TM > 64 and _vmem_block_bytes(TM, TN, D_pad, op_bytes) > ws_budget:
        TM = max(64, _round_up(TM // 2, 8))
    # TODO(synk): for extremely large in_features (D_pad >> 8192) tile D with an
    # f32 accumulator instead of holding the full reduction dim in VMEM.

    B_pad = _round_up(B8, TM)
    C_pad = _round_up(C128, TN)

    x_p = jnp.zeros((B_pad, D_pad), matmul_dtype).at[:B, :D].set(x_n.astype(matmul_dtype))
    w_p = jnp.zeros((C_pad, D_pad), matmul_dtype).at[:C, :D].set(w_n.astype(matmul_dtype))
    lbl = jnp.full((B_pad, 1), -1, jnp.int32).at[:B, 0].set(label.astype(jnp.int32))

    kernel = _make_arcmargin_kernel(s, m, easy_margin, TN)

    # Class tiles on the OUTER axis, batch tiles on the INNER axis: the W block
    # index is constant over the inner loop, so the dominant C*D weight stream is
    # fetched from HBM once; only the small x / label tiles re-stream per class tile.
    grid = (C_pad // TN, B_pad // TM)
    n_ctiles = grid[0]

    cost = pl.CostEstimate(
        flops=int(2 * B_pad * C_pad * D_pad),
        transcendentals=int(B_pad * n_ctiles),
        bytes_accessed=int(op_bytes * (C_pad * D_pad + B_pad * D_pad * n_ctiles)
                           + 4 * B_pad * C_pad + 4 * B_pad * n_ctiles),
    )

    ws = _vmem_block_bytes(TM, TN, D_pad, op_bytes)
    vmem_limit = int(min(int(0.85 * vmem_cap), max(16 * 1024 * 1024, 2 * ws)))

    out_p = pl.pallas_call(
        kernel,
        out_shape=jax.ShapeDtypeStruct((B_pad, C_pad), jnp.float32),
        grid_spec=pltpu.PrefetchScalarGridSpec(
            num_scalar_prefetch=0,
            grid=grid,
            in_specs=[
                pl.BlockSpec((TM, D_pad), lambda cj, bi: (bi, 0)),  # x  (unit-norm)
                pl.BlockSpec((TN, D_pad), lambda cj, bi: (cj, 0)),  # W  (unit-norm)
                pl.BlockSpec((TM, 1), lambda cj, bi: (bi, 0)),      # labels
            ],
            out_specs=pl.BlockSpec((TM, TN), lambda cj, bi: (bi, cj)),
        ),
        compiler_params=pltpu.CompilerParams(
            dimension_semantics=("parallel", "parallel"),
            vmem_limit_bytes=vmem_limit,
        ),
        cost_estimate=cost,
    )(x_p, w_p, lbl)

    return out_p[:B, :C]


def _reference(x, weight, label, s=30.0, m=0.5, easy_margin=False,
               matmul_dtype=jnp.float32):
    """Pure-JAX reference mirroring the PyTorch module (optionally with the same
    normalized-then-bf16-cast matmul operands as the kernel)."""
    eps = 1e-12
    xn = x / jnp.maximum(jnp.linalg.norm(x, axis=-1, keepdims=True), eps)
    wn = weight / jnp.maximum(jnp.linalg.norm(weight, axis=-1, keepdims=True), eps)
    cosine = jnp.dot(xn.astype(matmul_dtype), wn.astype(matmul_dtype).T,
                     preferred_element_type=jnp.float32)
    sine = jnp.sqrt(jnp.clip(1.0 - cosine ** 2, 0.0, 1.0))
    cos_m, sin_m = math.cos(m), math.sin(m)
    th, mm = math.cos(math.pi - m), math.sin(math.pi - m) * m
    phi = cosine * cos_m - sine * sin_m
    phi = (jnp.where(cosine > 0, phi, cosine) if easy_margin
           else jnp.where(cosine > th, phi, cosine - mm))
    one_hot = jax.nn.one_hot(label, cosine.shape[1], dtype=cosine.dtype)
    return (one_hot * phi + (1.0 - one_hot) * cosine) * s


if __name__ == "__main__":
    # Small, deterministic setup consistent with the module's __init__.
    B = 8
    in_features = 32
    out_features = 10
    s_param, m_param = 30.0, 0.5

    key = jax.random.PRNGKey(0)
    kx, kw, kl = jax.random.split(key, 3)

    x = jax.random.normal(kx, (B, in_features), dtype=jnp.float32)

    # nn.init.xavier_uniform_ on (out_features, in_features):
    bound = math.sqrt(6.0 / (in_features + out_features))
    weight = jax.random.uniform(
        kw, (out_features, in_features), dtype=jnp.float32,
        minval=-bound, maxval=bound)

    label = jax.random.randint(kl, (B,), 0, out_features, dtype=jnp.int32)

    for easy in (False, True):
        # Default path: bf16 MXU operands (unit-norm), vs a bf16-matched reference.
        out = jax.block_until_ready(
            arc_margin_product(x, weight, label, s=s_param, m=m_param,
                               easy_margin=easy))
        ref = _reference(x, weight, label, s=s_param, m=m_param, easy_margin=easy,
                         matmul_dtype=jnp.bfloat16)
        assert out.shape == (B, out_features)
        assert jnp.allclose(out, ref, atol=2e-2, rtol=2e-3), \
            f"bf16 path mismatch vs reference (easy_margin={easy})"

        # f32 path vs the f32 reference (tight tolerance).
        out32 = jax.block_until_ready(
            arc_margin_product(x, weight, label, s=s_param, m=m_param,
                               easy_margin=easy, matmul_dtype=jnp.float32))
        ref32 = _reference(x, weight, label, s=s_param, m=m_param, easy_margin=easy)
        assert jnp.allclose(out32, ref32, atol=1e-4, rtol=1e-4), \
            f"f32 path mismatch vs reference (easy_margin={easy})"

    print("KERNEL_OK")
</pallas_src>

<mosaic_0001>
module attributes {stable_mosaic.version = 11 : i64} {
  func.func @kernel(%arg0: i32, %arg1: i32, %arg2: memref<8x128xbf16, #tpu.memory_space<vmem>>, %arg3: memref<128x128xbf16, #tpu.memory_space<vmem>>, %arg4: memref<8x1xi32, #tpu.memory_space<vmem>>, %arg5: memref<8x128xf32, #tpu.memory_space<vmem>>) attributes {dimension_semantics = [#tpu.dimension_semantics<parallel>, #tpu.dimension_semantics<parallel>], iteration_bounds = array<i64: 1, 1>, scalar_prefetch = 0 : i64, scratch_operands = 0 : i64, tpu.core_type = #tpu.core_type<tc>, window_params = [{transform_indices = @transform_0, window_bounds = array<i64: 8, 128>}, {transform_indices = @transform_1, window_bounds = array<i64: 128, 128>}, {transform_indices = @transform_2, window_bounds = array<i64: 8, 1>}, {transform_indices = @transform_3, window_bounds = array<i64: 8, 128>}]} {
    %c0 = arith.constant 0 : index
    %c0_0 = arith.constant 0 : index
    %0 = vector.load %arg2[%c0, %c0_0] : memref<8x128xbf16, #tpu.memory_space<vmem>>, vector<8x128xbf16>
    %c0_1 = arith.constant 0 : index
    %c0_2 = arith.constant 0 : index
    %1 = vector.load %arg3[%c0_1, %c0_2] : memref<128x128xbf16, #tpu.memory_space<vmem>>, vector<128x128xbf16>
    %c0_3 = arith.constant 0 : index
    %c0_4 = arith.constant 0 : index
    %2 = vector.load %arg4[%c0_3, %c0_4] : memref<8x1xi32, #tpu.memory_space<vmem>>, vector<8x1xi32>
    %cst = arith.constant dense<0.000000e+00> : vector<8x128xf32>
    %3 = tpu.matmul %0, %1, %cst {dimension_numbers = #tpu.dot_dimension_numbers<[1], [1], [0], [0], [0, 0, 1, 0], [], []>} : vector<8x128xbf16>, vector<128x128xbf16>, vector<8x128xf32> -> vector<8x128xf32>
    %c128_i32 = arith.constant 128 : i32
    %4 = arith.muli %arg0, %c128_i32 : i32
    %5 = vector.broadcast %4 : i32 to vector<8x1xi32>
    %6 = arith.subi %2, %5 : vector<8x1xi32>
    %7 = tpu.iota {dimensions = array<i32: 1>} : vector<8x128xi32>
    %8 = vector.broadcast %6 : vector<8x1xi32> to vector<8x128xi32>
    %9 = arith.cmpi eq, %7, %8 : vector<8x128xi32>
    %cst_5 = arith.constant 0.000000e+00 : f32
    %10 = vector.broadcast %cst_5 : f32 to vector<8x128xf32>
    %11 = arith.select %9, %3, %10 : vector<8x128xi1>, vector<8x128xf32>
    %cst_6 = arith.constant dense<0.000000e+00> : vector<8xf32>
    %12 = vector.multi_reduction <add>, %11, %cst_6 [1] : vector<8x128xf32> to vector<8xf32>
    %13 = vector.shape_cast %12 : vector<8xf32> to vector<8x1xf32>
    %14 = arith.mulf %13, %13 : vector<8x1xf32>
    %cst_7 = arith.constant 1.000000e+00 : f32
    %15 = vector.broadcast %cst_7 : f32 to vector<8x1xf32>
    %16 = arith.subf %15, %14 : vector<8x1xf32>
    %cst_8 = arith.constant 0.000000e+00 : f32
    %17 = vector.broadcast %cst_8 : f32 to vector<8x1xf32>
    %18 = arith.maximumf %16, %17 : vector<8x1xf32>
    %19 = math.sqrt %18 : vector<8x1xf32>
    %cst_9 = arith.constant 0.87758255 : f32
    %20 = vector.broadcast %cst_9 : f32 to vector<8x1xf32>
    %21 = arith.mulf %13, %20 : vector<8x1xf32>
    %cst_10 = arith.constant 0.47942555 : f32
    %22 = vector.broadcast %cst_10 : f32 to vector<8x1xf32>
    %23 = arith.mulf %19, %22 : vector<8x1xf32>
    %24 = arith.subf %21, %23 : vector<8x1xf32>
    %cst_11 = arith.constant -0.87758255 : f32
    %25 = vector.broadcast %cst_11 : f32 to vector<8x1xf32>
    %26 = arith.cmpf ogt, %13, %25 : vector<8x1xf32>
    %cst_12 = arith.constant 0.239712775 : f32
    %27 = vector.broadcast %cst_12 : f32 to vector<8x1xf32>
    %28 = arith.subf %13, %27 : vector<8x1xf32>
    %29 = arith.select %26, %24, %28 : vector<8x1xi1>, vector<8x1xf32>
    %cst_13 = arith.constant 3.000000e+01 : f32
    %30 = vector.broadcast %cst_13 : f32 to vector<8x1xf32>
    %31 = arith.mulf %29, %30 : vector<8x1xf32>
    %cst_14 = arith.constant 3.000000e+01 : f32
    %32 = vector.broadcast %cst_14 : f32 to vector<8x128xf32>
    %33 = arith.mulf %3, %32 : vector<8x128xf32>
    %34 = vector.shape_cast %31 : vector<8x1xf32> to vector<8x1xf32>
    %35 = vector.broadcast %34 : vector<8x1xf32> to vector<8x128xf32>
    %36 = arith.select %9, %35, %33 : vector<8x128xi1>, vector<8x128xf32>
    %c0_15 = arith.constant 0 : index
    %c0_16 = arith.constant 0 : index
    %37 = vector.load %arg5[%c0_15, %c0_16] : memref<8x128xf32, #tpu.memory_space<vmem>>, vector<8x128xf32>
    tpu.vector_store %arg5[%c0_15, %c0_16], %36 {strides = array<i32>} : memref<8x128xf32, #tpu.memory_space<vmem>>, vector<8x128xf32>,
    return
  }
  func.func @transform_0(%arg0: i32, %arg1: i32) -> (i32, i32) {
    %c0_i32 = arith.constant 0 : i32
    %c0_i32_0 = arith.constant 0 : i32
    return %arg1, %c0_i32 : i32, i32
  }
  func.func @transform_1(%arg0: i32, %arg1: i32) -> (i32, i32) {
    %c0_i32 = arith.constant 0 : i32
    %c0_i32_0 = arith.constant 0 : i32
    return %arg0, %c0_i32 : i32, i32
  }
  func.func @transform_2(%arg0: i32, %arg1: i32) -> (i32, i32) {
    %c0_i32 = arith.constant 0 : i32
    %c0_i32_0 = arith.constant 0 : i32
    return %arg1, %c0_i32 : i32, i32
  }
  func.func @transform_3(%arg0: i32, %arg1: i32) -> (i32, i32) {
    %c0_i32 = arith.constant 0 : i32
    return %arg1, %arg0 : i32, i32
  }
}

</mosaic_0001>

<llo_original>
// kernel: tpu_custom_call.1
$region0: #{tpu_custom_call.1}
  #allocation0 [shape = 'u32[]', space=smem, size = 0x4, offset = 0x4, fixed_abs, tag = 'smem constant byte address 0x4 - core index']
  #allocation1 [shape = 'u32[144,128]{1,0:T(1,128)}', space=vmem, size = 0x12000, scoped, tag = 'internal scratch']
  %s0 = inlined_call_operand.vmem [shape: bf16[8,128], index: 0, kind: input, shape index: {}]
  %s1 = inlined_call_operand.hbm [shape: bf16[128,128], index: 1, kind: input, shape index: {}]
  %s2 = inlined_call_operand.vmem [shape: s32[8,1], index: 2, kind: input, shape index: {}]
  %s3 = inlined_call_operand.hbm [shape: f32[8,128], index: 3, kind: output, shape index: {}]
  %s4 = sld [smem:[#allocation0]]
  $region26: #{tpu_custom_call.1} parent=0
    _
  %s6 = ssub.s32 1, %s4
  %s7 = scalar_select 0, %s6, %s4
  $region1: #{tpu_custom_call.1} parent=0
    #allocation2 [shape = 'u8[32768]{0}', space=vmem, size = 0x8000, scoped, tag = 'input window, operand 1, single buffered']
    #allocation3 [shape = 's32[1]{0}', space=sflag, size = 0x4, scoped, tag = 'scoped memory for tpu_custom_call.1']
    #allocation4 [shape = 's32[1]{0}', space=sflag, size = 0x4, scoped, tag = 'scoped memory for tpu_custom_call.1']
    #allocation5 [shape = 'u8[4096]{0}', space=vmem, size = 0x1000, scoped, tag = 'output window, operand 0, single buffered']
    %8 = vsyncpa [#allocation3], 0
    %9 = vsyncpa [#allocation4], 0
    // Predicated region
    $region2: #{tpu_custom_call.1} parent=1 // pred_check
      _
    $region3: #{tpu_custom_call.1} parent=1 // pred_check_branch
      %11 = sbr.rel (0) target = $region5
    $region4: #{tpu_custom_call.1} parent=1 // pred_region
      _
    $region5: #{tpu_custom_call.1} parent=1 // pred_fallthru
      _
    // Predicated region
    $region6: #{tpu_custom_call.1} parent=1 // pred_check
      _
    $region7: #{tpu_custom_call.1} parent=1 // pred_check_branch
      %13 = sbr.rel (0) target = $region9
    $region8: #{tpu_custom_call.1} parent=1 // pred_region
      %s15 = ssub.s32 1024, 1024
      %16 = vsyncadd [#allocation3], %s15
      %s17 = sshll.u32 [#allocation2], 4
      %s18 = int_to_ptr.vmem [resolvable:$true] %s17
      %23 = dma.hbm_to_vmem [thread:$0]  %s1, 1024, %s18, [#allocation3], 64, 64, 4
    $region9: #{tpu_custom_call.1} parent=1 // pred_fallthru
      _
    // Predicated region
    $region10: #{tpu_custom_call.1} parent=1 // pred_check
      _
    $region11: #{tpu_custom_call.1} parent=1 // pred_check_branch
      %25 = sbr.rel (0) target = $region13
    $region12: #{tpu_custom_call.1} parent=1 // pred_region
      _
    $region13: #{tpu_custom_call.1} parent=1 // pred_fallthru
      _
    // Predicated region
    $region14: #{tpu_custom_call.1} parent=1 // pred_check
      _
    $region15: #{tpu_custom_call.1} parent=1 // pred_check_branch
      %27 = sbr.rel (0) target = $region17
    $region16: #{tpu_custom_call.1} parent=1 // pred_region
      %28 = dma.done [#allocation3], 1024
    $region17: #{tpu_custom_call.1} parent=1 // pred_fallthru
      _
    %v30 = vld [vmem:[%s0] sm:$0xf]
    %v31 = vld [vmem:[#allocation2] sm:$0xf]
    %v32 = vld [vmem:[#allocation2 + $0x4] sm:$0xf]
    %v33 = vld [vmem:[#allocation2 + $0x8] sm:$0xf]
    %v34 = vld [vmem:[#allocation2 + $0xc] sm:$0xf]
    %v35 = vld [vmem:[#allocation2 + $0x10] sm:$0xf]
    %v36 = vld [vmem:[#allocation2 + $0x14] sm:$0xf]
    %v37 = vld [vmem:[#allocation2 + $0x18] sm:$0xf]
    %v38 = vld [vmem:[#allocation2 + $0x1c] sm:$0xf]
    %v39 = vld [vmem:[#allocation2 + $0x20] sm:$0xf]
    %v40 = vld [vmem:[#allocation2 + $0x24] sm:$0xf]
    %v41 = vld [vmem:[#allocation2 + $0x28] sm:$0xf]
    %v42 = vld [vmem:[#allocation2 + $0x2c] sm:$0xf]
    %v43 = vld [vmem:[#allocation2 + $0x30] sm:$0xf]
    %v44 = vld [vmem:[#allocation2 + $0x34] sm:$0xf]
    %v45 = vld [vmem:[#allocation2 + $0x38] sm:$0xf]
    %v46 = vld [vmem:[#allocation2 + $0x3c] sm:$0xf]
    %v47 = vld [vmem:[%s2] sm:$0xff]
    %v64 = vunpack.c.l.b16 %v31
    %v65 = vunpack.c.l.b16 %v32
    %v66 = vunpack.c.l.b16 %v33
    %v67 = vunpack.c.l.b16 %v34
    %v68 = vunpack.c.l.b16 %v35
    %v69 = vunpack.c.l.b16 %v36
    %v70 = vunpack.c.l.b16 %v37
    %v71 = vunpack.c.l.b16 %v38
    %v72 = vunpack.c.l.b16 %v39
    %v73 = vunpack.c.l.b16 %v40
    %v74 = vunpack.c.l.b16 %v41
    %v75 = vunpack.c.l.b16 %v42
    %v76 = vunpack.c.l.b16 %v43
    %v77 = vunpack.c.l.b16 %v44
    %v78 = vunpack.c.l.b16 %v45
    %v79 = vunpack.c.l.b16 %v46
    %v80 = vpack.c.b16 %v65, %v64
    %v81 = vpack.c.b16 %v67, %v66
    %v82 = vpack.c.b16 %v69, %v68
    %v83 = vpack.c.b16 %v71, %v70
    %v84 = vpack.c.b16 %v73, %v72
    %v85 = vpack.c.b16 %v75, %v74
    %v86 = vpack.c.b16 %v77, %v76
    %v87 = vpack.c.b16 %v79, %v78
    %96 = vmatprep.subr.bf16.mxu0 0
    %97 = vmatpush1.bf16.xpose.msra.mxu0 %v80
    %98 = vmatprep.subr.bf16.mxu0 0
    %99 = vmatpush1.bf16.xpose.msra.mxu0 %v81
    %100 = vmatprep.subr.bf16.mxu0 0
    %101 = vmatpush1.bf16.xpose.msra.mxu0 %v82
    %102 = vmatprep.subr.bf16.mxu0 0
    %103 = vmatpush1.bf16.xpose.msra.mxu0 %v83
    %104 = vmatprep.subr.bf16.mxu0 0
    %105 = vmatpush1.bf16.xpose.msra.mxu0 %v84
    %106 = vmatprep.subr.bf16.mxu0 0
    %107 = vmatpush1.bf16.xpose.msra.mxu0 %v85
    %108 = vmatprep.subr.bf16.mxu0 0
    %109 = vmatpush1.bf16.xpose.msra.mxu0 %v86
    %110 = vmatprep.subr.bf16.mxu0 0
    %111 = vmatpush1.bf16.xpose.msra.mxu0 %v87
    %112 = vmatprep.subr.bf16.mxu0 0
    %113 = vmatpush1.bf16.xpose.msra.mxu0 0
    %114 = vmatprep.subr.bf16.mxu0 0
    %115 = vmatpush1.bf16.xpose.msra.mxu0 0
    %116 = vmatprep.subr.bf16.mxu0 0
    %117 = vmatpush1.bf16.xpose.msra.mxu0 0
    %118 = vmatprep.subr.bf16.mxu0 0
    %119 = vmatpush1.bf16.xpose.msra.mxu0 0
    %120 = vmatprep.subr.bf16.mxu0 0
    %121 = vmatpush1.bf16.xpose.msra.mxu0 0
    %122 = vmatprep.subr.bf16.mxu0 0
    %123 = vmatpush1.bf16.xpose.msra.mxu0 0
    %124 = vmatprep.subr.bf16.mxu0 0
    %125 = vmatpush1.bf16.xpose.msra.mxu0 0
    %126 = vmatprep.subr.bf16.mxu0 0
    %127 = vmatpush1.bf16.xpose.msra.mxu0 0
    %128 = vmatprep.mubr.bf16.mxu0 0
    %129 = vmatmul.mubr.bf16.gmra.mrb[0].mxu0 %v30
    %v130 = vpop.f32.mrb[0].mxu0
    %v131 = vadd.f32 0.0, %v130
    %v132 = vpop.f32.mrb[0].mxu0
    %v133 = vpop.f32.mrb[0].mxu0
    %v134 = vpop.f32.mrb[0].mxu0
    %135 = vdwg.mxu0
    %s136 = smul.u32 0, 128
    %v137 = vstv %s136
    %v138 = vsub.s32 %v47, %v137
    %v139 = vlaneseq
    %v140 = vand.u32 %v139, 127
    %141 = vset.pattern.permute.xlu0 0
    %142 = vperm.xlu0 %141, %v138
    %v143 = vpop.permute.xlu0 %142
    %vm144 = vcmp.eq.s32.totalorder %v140, %v143
    %v145 = vsel %vm144, %v131, 0.0
    %146 = vadd.xlane.f32.xlu0 %v145
    %v147 = vpop.xlane.xlu0 %146
    %v148 = vmul.f32 %v147, %v147
    %v149 = vsub.f32 1.0, %v148
    %v150 = vmax.f32 %v149, 0.0
    %v151 = vrsqrt.pop %v150
    %v152 = vmul.f32 %v150, %v151
    %vm153 = vcmp.eq.f32.partialorder %v150, inf
    %v154 = vsel %vm153, %v150, %v152
    %vm155 = vcmp.eq.f32.partialorder %v150, 0.0
    %v156 = vand.u32 %v150, 2147483648
    %v157 = vsel %vm155, %v156, %v154
    %v158 = vmul.f32 %v147, 0.87758255
    %v159 = vmul.f32 %v157, 0.47942555
    %v160 = vsub.f32 %v158, %v159
    %vm161 = vcmp.gt.f32.partialorder %v147, -0.87758255
    %v162 = vsub.f32 %v147, 0.23971277
    %v163 = vsel %vm161, %v160, %v162
    %v164 = vmul.f32 %v163, 30.0
    %v165 = vmul.f32 %v131, 30.0
    %v166 = vsel %vm144, %v164, %v165
    %167 = vst [vmem:[#allocation5] sm:$0xff] %v166
    // Predicated region
    $region18: #{tpu_custom_call.1} parent=1 // pred_check
      _
    $region19: #{tpu_custom_call.1} parent=1 // pred_check_branch
      %169 = sbr.rel (0) target = $region21
    $region20: #{tpu_custom_call.1} parent=1 // pred_region
      %s171 = ssub.s32 128, 128
      %172 = vsyncadd [#allocation4], %s171
      %s174 = sshll.u32 [#allocation5], 4
      %s175 = int_to_ptr.vmem [resolvable:$true] %s174
      %177 = dma.vmem_to_hbm [thread:$0]  %s175, 128, %s3, [#allocation4]
    $region21: #{tpu_custom_call.1} parent=1 // pred_fallthru
      _
    // Predicated region
    $region22: #{tpu_custom_call.1} parent=1 // pred_check
      _
    $region23: #{tpu_custom_call.1} parent=1 // pred_check_branch
      %179 = sbr.rel (0) target = $region25
    $region24: #{tpu_custom_call.1} parent=1 // pred_region
      %180 = dma.done [#allocation4], 128
    $region25: #{tpu_custom_call.1} parent=1 // pred_fallthru
      _
    %181 = vsyncpa [#allocation3], 1
    %182 = vsyncpa [#allocation4], 1

</llo_original>
